<compile_context>
chip_gen: v7x
topology: tpu7x:2x2x1
jax: 0.10.0
libtpu: 0.0.40
codegen_flags: <defaults>
</compile_context>

<pallas_src>
from functools import partial

import jax
import jax.numpy as jnp
from jax import lax
from jax.experimental import pallas as pl
from jax.experimental.pallas import tpu as pltpu


def _tv_kernel(x_ref, out_ref, *, H, W):
    """x_ref: (TBC, H*W) lane-dense block of whole images. out_ref: (1, 2) SMEM."""
    x = x_ref[...].astype(jnp.float32)                 # (TBC, HW)
    tbc, hw = x.shape

    col = lax.broadcasted_iota(jnp.int32, (tbc, hw), 1)

    # ---- vertical (height) differences: x[i+W] - x[i], skip last image row.
    x_down = pltpu.roll(x, hw - W, 1)                  # x_down[i] = x[(i+W) % hw]
    dh = jnp.where(col < (H - 1) * W, x_down - x, 0.0)
    out_ref[0, 0] = jnp.sum(dh * dh)

    # ---- horizontal (width) differences: x[i+1] - x[i], skip last column.
    x_right = pltpu.roll(x, hw - 1, 1)                 # x_right[i] = x[(i+1) % hw]
    if (W & (W - 1)) == 0:                             # power-of-two W: modulo -> AND
        last_col = (col & (W - 1)) == (W - 1)
    else:
        last_col = (col % W) == (W - 1)
    dw = jnp.where(last_col, 0.0, x_right - x)
    out_ref[0, 1] = jnp.sum(dw * dw)


def _pick_tbc(bc, hw, target_block_bytes=2 * 1024 * 1024):
    """Pick rows-per-block (a divisor of bc) for the (bc, hw) lane-dense view.

    Constraints / preferences:
      * tbc % 8 == 0 or tbc == bc   (keeps the BlockSpec sublane dim legal)
      * f32 block (tbc*hw*4 bytes) <= target_block_bytes
      * prefer an even number of blocks >= 2 (megacore + pipelining),
        otherwise any >= 2, otherwise the largest block that fits.
    """
    divisors = [t for t in range(1, bc + 1) if bc % t == 0]
    shape_ok = [t for t in divisors if t % 8 == 0 or t == bc]
    valid = [t for t in shape_ok if t * hw * 4 <= target_block_bytes]
    if not valid:
        # Can't satisfy the budget (e.g. a single huge image per row).
        # TODO(synk): tile H*W along the lane axis with a one-row halo for
        # single images larger than the VMEM budget (e.g. 4K f32 frames).
        return min(shape_ok) if shape_ok else bc

    even_multi = [t for t in valid if (bc // t) >= 2 and (bc // t) % 2 == 0]
    if even_multi:
        return max(even_multi)
    multi = [t for t in valid if (bc // t) >= 2]
    if multi:
        return max(multi)
    return max(valid)


def total_variation_loss(x, weight=1.0):
    """Matches TotalVariationLoss.forward for NCHW input x."""
    B, C, H, W = x.shape
    bc = B * C
    hw = H * W
    # Lane-dense view: one whole image per row (pure view, contiguous in HBM).
    xr = x.reshape(bc, hw)

    tbc = _pick_tbc(bc, hw)
    num_blocks = bc // tbc

    # Real in-kernel footprint: double-buffered HBM input + ~5 block f32/i32 temps.
    itemsize = jnp.dtype(x.dtype).itemsize
    footprint = tbc * hw * (2 * itemsize + 20)
    vmem_limit = int(min(max(32 * 1024 * 1024, footprint + (2 << 20)),
                         48 * 1024 * 1024))

    parts = pl.pallas_call(
        partial(_tv_kernel, H=H, W=W),
        out_shape=jax.ShapeDtypeStruct((num_blocks, 2), jnp.float32),
        grid_spec=pltpu.PrefetchScalarGridSpec(
            num_scalar_prefetch=0,
            grid=(num_blocks,),
            in_specs=[pl.BlockSpec((tbc, hw), lambda i: (i, 0))],
            out_specs=pl.BlockSpec((1, 2), lambda i: (i, 0),
                                   memory_space=pltpu.SMEM),
        ),
        compiler_params=pltpu.CompilerParams(
            dimension_semantics=("parallel",),
            vmem_limit_bytes=vmem_limit,
        ),
    )(xr)

    h_tv = jnp.sum(parts[:, 0])
    w_tv = jnp.sum(parts[:, 1])

    # Same scalar arithmetic as the PyTorch forward (no W==2 fixup needed:
    # the col-based masks count every adjacent pair exactly once).
    return (jnp.float32(weight) * 2.0
            * (h_tv / (H - 1) / W + w_tv / H / (W - 1)) / B)


if __name__ == "__main__":
    key = jax.random.PRNGKey(0)
    x = jax.random.normal(key, (2, 4, 16, 16), dtype=jnp.float32)

    loss = total_variation_loss(x, weight=1.0)
    loss = jax.block_until_ready(loss)

    # Pure-JAX reference (also pins the pltpu.roll sign convention).
    h_tv = jnp.sum((x[:, :, 1:, :] - x[:, :, :-1, :]) ** 2)
    w_tv = jnp.sum((x[:, :, :, 1:] - x[:, :, :, :-1]) ** 2)
    B, C, H, W = x.shape
    ref = 1.0 * 2 * (h_tv / (H - 1) / W + w_tv / H / (W - 1)) / B
    assert jnp.allclose(loss, ref, rtol=1e-4, atol=1e-5), (loss, ref)

    print("KERNEL_OK")
</pallas_src>

<mosaic_0001>
module attributes {stable_mosaic.version = 11 : i64} {
  func.func @_tv_kernel(%arg0: i32, %arg1: memref<8x256xf32, #tpu.memory_space<vmem>>, %arg2: memref<1x2xf32, #tpu.memory_space<smem>>) attributes {dimension_semantics = [#tpu.dimension_semantics<parallel>], iteration_bounds = array<i64: 1>, scalar_prefetch = 0 : i64, scratch_operands = 0 : i64, tpu.core_type = #tpu.core_type<tc>, window_params = [{transform_indices = @transform_0, window_bounds = array<i64: 8, 256>}, {transform_indices = @transform_1, window_bounds = array<i64: 1, 2>}]} {
    %c0 = arith.constant 0 : index
    %c0_0 = arith.constant 0 : index
    %0 = vector.load %arg1[%c0, %c0_0] : memref<8x256xf32, #tpu.memory_space<vmem>>, vector<8x256xf32>
    %1 = tpu.iota {dimensions = array<i32: 1>} : vector<8x256xi32>
    %c240_i32 = arith.constant 240 : i32
    %2 = tpu.dynamic_rotate %0 by %c240_i32 dim 1 : vector<8x256xf32>, i32 -> vector<8x256xf32>
    %c240_i32_1 = arith.constant 240 : i32
    %3 = vector.broadcast %c240_i32_1 : i32 to vector<8x256xi32>
    %4 = arith.cmpi slt, %1, %3 : vector<8x256xi32>
    %5 = arith.subf %2, %0 : vector<8x256xf32>
    %cst = arith.constant 0.000000e+00 : f32
    %6 = vector.broadcast %cst : f32 to vector<8x256xf32>
    %7 = arith.select %4, %5, %6 : vector<8x256xi1>, vector<8x256xf32>
    %8 = arith.mulf %7, %7 : vector<8x256xf32>
    %9 = vector.shape_cast %8 : vector<8x256xf32> to vector<1x8x256xf32>
    %cst_2 = arith.constant dense<0.000000e+00> : vector<1xf32>
    %10 = vector.multi_reduction <add>, %9, %cst_2 [1, 2] : vector<1x8x256xf32> to vector<1xf32>
    %11 = vector.shape_cast %10 : vector<1xf32> to vector<1x1x1xf32>
    %12 = vector.extract %11[0, 0, 0] : f32 from vector<1x1x1xf32>
    %c0_3 = arith.constant 0 : index
    %c0_4 = arith.constant 0 : index
    %13 = memref.load %arg2[%c0_3, %c0_4] : memref<1x2xf32, #tpu.memory_space<smem>>
    memref.store %12, %arg2[%c0_3, %c0_4] : memref<1x2xf32, #tpu.memory_space<smem>>
    %c255_i32 = arith.constant 255 : i32
    %14 = tpu.dynamic_rotate %0 by %c255_i32 dim 1 : vector<8x256xf32>, i32 -> vector<8x256xf32>
    %c15_i32 = arith.constant 15 : i32
    %15 = vector.broadcast %c15_i32 : i32 to vector<8x256xi32>
    %16 = arith.andi %1, %15 : vector<8x256xi32>
    %c15_i32_5 = arith.constant 15 : i32
    %17 = vector.broadcast %c15_i32_5 : i32 to vector<8x256xi32>
    %18 = arith.cmpi eq, %16, %17 : vector<8x256xi32>
    %19 = arith.subf %14, %0 : vector<8x256xf32>
    %cst_6 = arith.constant 0.000000e+00 : f32
    %20 = vector.broadcast %cst_6 : f32 to vector<8x256xf32>
    %21 = arith.select %18, %20, %19 : vector<8x256xi1>, vector<8x256xf32>
    %22 = arith.mulf %21, %21 : vector<8x256xf32>
    %23 = vector.shape_cast %22 : vector<8x256xf32> to vector<1x8x256xf32>
    %cst_7 = arith.constant dense<0.000000e+00> : vector<1xf32>
    %24 = vector.multi_reduction <add>, %23, %cst_7 [1, 2] : vector<1x8x256xf32> to vector<1xf32>
    %25 = vector.shape_cast %24 : vector<1xf32> to vector<1x1x1xf32>
    %26 = vector.extract %25[0, 0, 0] : f32 from vector<1x1x1xf32>
    %c0_8 = arith.constant 0 : index
    %c1 = arith.constant 1 : index
    %27 = memref.load %arg2[%c0_8, %c1] : memref<1x2xf32, #tpu.memory_space<smem>>
    memref.store %26, %arg2[%c0_8, %c1] : memref<1x2xf32, #tpu.memory_space<smem>>
    return
  }
  func.func @transform_0(%arg0: i32) -> (i32, i32) {
    %c0_i32 = arith.constant 0 : i32
    %c0_i32_0 = arith.constant 0 : i32
    return %arg0, %c0_i32 : i32, i32
  }
  func.func @transform_1(%arg0: i32) -> (i32, i32) {
    %c0_i32 = arith.constant 0 : i32
    %c0_i32_0 = arith.constant 0 : i32
    return %arg0, %c0_i32 : i32, i32
  }
}

</mosaic_0001>

<llo_original>
// kernel: tpu_custom_call.1
$region0: #{tpu_custom_call.1}
  #allocation0 [shape = 'u32[]', space=smem, size = 0x4, offset = 0x4, fixed_abs, tag = 'smem constant byte address 0x4 - core index']
  #allocation1 [shape = 'u32[144,128]{1,0:T(1,128)}', space=vmem, size = 0x12000, scoped, tag = 'internal scratch']
  %s0 = inlined_call_operand.hbm [shape: f32[8,256], index: 0, kind: input, shape index: {}]
  %s1 = inlined_call_operand.hbm [shape: f32[1,2], index: 1, kind: output, shape index: {}]
  %s2 = sld [smem:[#allocation0]]
  $region18: #{tpu_custom_call.1} parent=0
    _
  %s4 = ssub.s32 1, %s2
  %s5 = scalar_select 0, %s4, %s2
  $region1: #{tpu_custom_call.1} parent=0
    #allocation2 [shape = 'u8[8192]{0}', space=vmem, size = 0x2000, scoped, tag = 'input window, operand 0, single buffered']
    #allocation3 [shape = 's32[1]{0}', space=sflag, size = 0x4, scoped, tag = 'scoped memory for tpu_custom_call.1']
    #allocation4 [shape = 's32[1]{0}', space=sflag, size = 0x4, scoped, tag = 'scoped memory for tpu_custom_call.1']
    #allocation5 [shape = 'u8[512]{0}', space=smem, size = 0x200, scoped, tag = 'output window, operand 0, single buffered']
    %6 = vsyncpa [#allocation3], 0
    %7 = vsyncpa [#allocation4], 0
    // Predicated region
    $region2: #{tpu_custom_call.1} parent=1 // pred_check
      _
    $region3: #{tpu_custom_call.1} parent=1 // pred_check_branch
      %9 = sbr.rel (0) target = $region5
    $region4: #{tpu_custom_call.1} parent=1 // pred_region
      %s11 = ssub.s32 256, 256
      %12 = vsyncadd [#allocation3], %s11
      %s14 = sshll.u32 [#allocation2], 4
      %s15 = int_to_ptr.vmem [resolvable:$true] %s14
      %17 = dma.hbm_to_vmem [thread:$0]  %s0, 256, %s15, [#allocation3]
    $region5: #{tpu_custom_call.1} parent=1 // pred_fallthru
      _
    // Predicated region
    $region6: #{tpu_custom_call.1} parent=1 // pred_check
      _
    $region7: #{tpu_custom_call.1} parent=1 // pred_check_branch
      %19 = sbr.rel (0) target = $region9
    $region8: #{tpu_custom_call.1} parent=1 // pred_region
      %20 = dma.done [#allocation3], 256
    $region9: #{tpu_custom_call.1} parent=1 // pred_fallthru
      _
    %v21 = vld [vmem:[#allocation2] sm:$0xff]
    %v22 = vld [vmem:[#allocation2 + $0x8] sm:$0xff]
    %v23 = vlaneseq
    %v24 = vand.u32 %v23, 127
    %v25 = vadd.s32 %v24, 128
    %26 = vrot.lane.b32.xlu0 %v21, 112
    %v27 = vpop.permute.xlu0 %26
    %28 = vrot.lane.b32.xlu0 %v22, 112
    %v29 = vpop.permute.xlu0 %28
    %vm30 = vcmp.lt.s32.totalorder %v24, 112
    %v31 = vsel %vm30, %v27, %v29
    %v32 = vsel %vm30, %v29, %v27
    %vm33 = vcmp.lt.s32.totalorder %v24, 240
    %vm34 = vcmp.lt.s32.totalorder %v25, 240
    %v35 = vsub.f32 %v31, %v21
    %v36 = vsub.f32 %v32, %v22
    %v37 = vsel %vm33, %v35, 0.0
    %v38 = vsel %vm34, %v36, 0.0
    %v39 = vmul.f32 %v37, %v37
    %v40 = vmul.f32 %v38, %v38
    %v41 = vadd.f32 %v39, %v40
    %42 = vadd.xlane.f32.xlu0 %v41
    %v43 = vpop.xlane.xlu0 %42
    %v44 = vrot.slane %v43, 4
    %v45 = vadd.f32 %v43, %v44
    %v46 = vrot.slane %v45, 2
    %v47 = vadd.f32 %v45, %v46
    %v48 = vrot.slane %v47, 1
    %v49 = vadd.f32 %v47, %v48
    %s50 = vtos %v49
    %s51 = scalar_lea.smem [#allocation5], 0
    %52 = sst [smem:[%s51]] %s50
    %53 = vrot.lane.b32.xlu0 %v21, 127
    %v54 = vpop.permute.xlu0 %53
    %55 = vrot.lane.b32.xlu0 %v22, 127
    %v56 = vpop.permute.xlu0 %55
    %vm57 = vcmp.lt.s32.totalorder %v24, 127
    %v58 = vsel %vm57, %v54, %v56
    %v59 = vsel %vm57, %v56, %v54
    %v60 = vand.u32 %v24, 15
    %v61 = vand.u32 %v25, 15
    %vm62 = vcmp.eq.s32.totalorder %v60, 15
    %vm63 = vcmp.eq.s32.totalorder %v61, 15
    %v64 = vsub.f32 %v58, %v21
    %v65 = vsub.f32 %v59, %v22
    %v66 = vsel %vm62, 0.0, %v64
    %v67 = vsel %vm63, 0.0, %v65
    %v68 = vmul.f32 %v66, %v66
    %v69 = vmul.f32 %v67, %v67
    %v70 = vadd.f32 %v68, %v69
    %71 = vadd.xlane.f32.xlu0 %v70
    %v72 = vpop.xlane.xlu0 %71
    %v73 = vrot.slane %v72, 4
    %v74 = vadd.f32 %v72, %v73
    %v75 = vrot.slane %v74, 2
    %v76 = vadd.f32 %v74, %v75
    %v77 = vrot.slane %v76, 1
    %v78 = vadd.f32 %v76, %v77
    %s79 = vtos %v78
    %s80 = scalar_lea.smem [#allocation5], 1
    %81 = sst [smem:[%s80]] %s79
    // Predicated region
    $region10: #{tpu_custom_call.1} parent=1 // pred_check
      _
    $region11: #{tpu_custom_call.1} parent=1 // pred_check_branch
      %83 = sbr.rel (0) target = $region13
    $region12: #{tpu_custom_call.1} parent=1 // pred_region
      %s85 = ssub.s32 16, 16
      %86 = vsyncadd [#allocation4], %s85
      %89 = dma.smem_to_hbm [#allocation5], 16, %s1, [#allocation4]
    $region13: #{tpu_custom_call.1} parent=1 // pred_fallthru
      _
    // Predicated region
    $region14: #{tpu_custom_call.1} parent=1 // pred_check
      _
    $region15: #{tpu_custom_call.1} parent=1 // pred_check_branch
      %91 = sbr.rel (0) target = $region17
    $region16: #{tpu_custom_call.1} parent=1 // pred_region
      %92 = dma.done [#allocation4], 16
    $region17: #{tpu_custom_call.1} parent=1 // pred_fallthru
      _
    %93 = sfence
    %94 = vsyncpa [#allocation3], 1
    %95 = vsyncpa [#allocation4], 1

</llo_original>
